<compile_context>
chip_gen: v7x
topology: tpu7x:2x2x1
jax: 0.10.0
libtpu: 0.0.40
codegen_flags: <defaults>
</compile_context>

<pallas_src>
import jax
import jax.numpy as jnp
from jax import lax
from jax.experimental import pallas as pl
from jax.experimental.pallas import tpu as pltpu

TS = 8  # timesteps per recurrence block == capped unroll factor


# ---------------------------------------------------------------------------
# Phase 1: BatchNorm1d batch statistics (partial-sum accumulator over row blocks)
# ---------------------------------------------------------------------------
def bn_stats_kernel(x_ref, s_ref):
    """x_ref: (RB, C) f32 row block.  s_ref: (2, C) f32 [sum ; sum of squares]."""
    @pl.when(pl.program_id(0) == 0)
    def _():
        s_ref[...] = jnp.zeros_like(s_ref)
    x = x_ref[...]
    s_ref[...] += jnp.concatenate(
        [jnp.sum(x, axis=0, keepdims=True),
         jnp.sum(x * x, axis=0, keepdims=True)], axis=0)


# ---------------------------------------------------------------------------
# Phase 2: BN apply + Hardtanh(0, 20) + fused input projection of BOTH GRU
#          directions: (rows, C) @ (C, 6*H_pad) -> bf16 gates written to HBM.
# ---------------------------------------------------------------------------
def _make_bn_project_kernel(inv_n):
    def bn_project_kernel(x_ref, stats_ref, gamma_ref, beta_ref,
                          wih_ref, ball_ref, g_ref):
        s = stats_ref[...]
        mean = s[0:1, :] * inv_n
        var = s[1:2, :] * inv_n - mean * mean        # biased var (PyTorch train)
        scale = gamma_ref[...] * lax.rsqrt(var + 1e-5)
        shift = beta_ref[...] - mean * scale
        xa = jnp.clip(x_ref[...] * scale + shift, 0.0, 20.0)
        gi = jnp.dot(xa.astype(jnp.bfloat16), wih_ref[...],
                     preferred_element_type=jnp.float32) + ball_ref[...]
        g_ref[...] = gi.astype(jnp.bfloat16)
    return bn_project_kernel


# ---------------------------------------------------------------------------
# Phase 3: bidirectional GRU recurrence over time blocks (gates streamed in).
# ---------------------------------------------------------------------------
def gru_recurrence_kernel(ml_ref, lens_ref, gf_ref, gb_ref, whf_ref, whb_ref,
                          bhnf_ref, bhnb_ref, outf_ref, outb_ref,
                          hf_ref, hb_ref):
    ts, bp, h3 = gf_ref.shape           # (TS, B_pad, 3*H_pad)
    hp = h3 // 3
    i = pl.program_id(0)
    nblk = pl.num_programs(0)

    @pl.when(i == 0)                    # reset both direction carries
    def _():
        hf_ref[...] = jnp.zeros_like(hf_ref)
        hb_ref[...] = jnp.zeros_like(hb_ref)

    ml = ml_ref[0]                      # max(lengths), scalar-prefetched (SMEM)
    tf0 = i * ts                        # first global time of the fwd block
    tb0 = (nblk - 1 - i) * ts           # first global time of the bwd block
    both_dead = jnp.logical_and(tf0 >= ml, tb0 >= ml)

    @pl.when(both_dead)                 # whole block past every sequence:
    def _():                            # skip the hidden matmuls, emit zeros.
        outf_ref[...] = jnp.zeros_like(outf_ref)
        outb_ref[...] = jnp.zeros_like(outb_ref)

    @pl.when(jnp.logical_not(both_dead))
    def _():
        lens = lens_ref[...]                                # (B_pad, 1) int32
        w_f = whf_ref[...]                                  # (H_pad, 3H_pad) bf16
        w_b = whb_ref[...]
        bhn_f = jnp.broadcast_to(bhnf_ref[...], (bp, hp))   # hoisted broadcasts
        bhn_b = jnp.broadcast_to(bhnb_ref[...], (bp, hp))

        def cell(g, h, w, bhn):
            # ONE fused hidden-side matmul per direction per step (MXU, bf16).
            gh = jnp.dot(h.astype(jnp.bfloat16), w,
                         preferred_element_type=jnp.float32)   # (B_pad, 3H_pad)
            r = jax.nn.sigmoid(g[:, :hp] + gh[:, :hp])
            z = jax.nn.sigmoid(g[:, hp:2 * hp] + gh[:, hp:2 * hp])
            n = jnp.tanh(g[:, 2 * hp:] + r * (gh[:, 2 * hp:] + bhn))
            # TODO(synk): on v6e/v7x the elementwise gate math could run in bf16
            # (f32 carry kept); kept f32 so the same kernel is safe on v5e.
            return (1.0 - z) * n + z * h

        h_f = hf_ref[...]
        h_b = hb_ref[...]
        for j in range(ts):             # capped unroll (= TS); block boundary
            jb = ts - 1 - j             # bounds live ranges between blocks
            # forward direction, global time tf0 + j
            hf_new = cell(gf_ref[j].astype(jnp.float32), h_f, w_f, bhn_f)
            vf = lens > (tf0 + j)
            outf_ref[j] = jnp.where(vf, hf_new, 0.0)   # packed semantics: zeros
            h_f = jnp.where(vf, hf_new, h_f)           # carry frozen past length
            # backward direction, global time tb0 + jb (descending inside block)
            hb_new = cell(gb_ref[jb].astype(jnp.float32), h_b, w_b, bhn_b)
            vb = lens > (tb0 + jb)
            outb_ref[jb] = jnp.where(vb, hb_new, 0.0)
            h_b = jnp.where(vb, hb_new, h_b)           # stays 0 until t < len
        hf_ref[...] = h_f
        hb_ref[...] = h_b


# ---------------------------------------------------------------------------
# Wrapper / parameter packing
# ---------------------------------------------------------------------------
def _round_up(v, m):
    return ((v + m - 1) // m) * m


def _vmem_cap_bytes():
    try:
        return int(pltpu.get_tpu_info().vmem_capacity_bytes) * 7 // 8
    except Exception:
        return 56 << 20                 # v7x-safe conservative fallback


def _vmem_limit(working_set_bytes):
    cap = _vmem_cap_bytes()
    return int(min(max(working_set_bytes * 3 // 2 + (2 << 20), 8 << 20), cap))


def _prepare_kernel_params(params, H, H_pad):
    """Repack PyTorch-layout GRU params into padded, gate-aligned kernel layout."""
    def pad_gate_cols(w):               # (rows, 3H) -> (rows, 3H_pad), [r|z|n]
        parts = [jnp.pad(w[:, g * H:(g + 1) * H], ((0, 0), (0, H_pad - H)))
                 for g in range(3)]
        return jnp.concatenate(parts, axis=1)

    def fold(b_ih, b_hh):               # fold b_hr/b_hz; b_hn stays in r*(...)
        return jnp.concatenate([b_ih[:, :2 * H] + b_hh[:, :2 * H],
                                b_ih[:, 2 * H:]], axis=1)

    def pad_hh(w):                      # (H, 3H) -> (H_pad, 3H_pad) bf16
        return jnp.pad(pad_gate_cols(w),
                       ((0, H_pad - H), (0, 0))).astype(jnp.bfloat16)

    w_ih_all = jnp.concatenate(
        [pad_gate_cols(params["w_ih_f"]), pad_gate_cols(params["w_ih_b"])],
        axis=1).astype(jnp.bfloat16)                        # (C, 6*H_pad)
    b_all = jnp.concatenate(
        [pad_gate_cols(fold(params["b_ih_f"], params["b_hh_f"])),
         pad_gate_cols(fold(params["b_ih_b"], params["b_hh_b"]))], axis=1)

    return dict(
        w_ih_all=w_ih_all, b_all=b_all,
        w_hh_f=pad_hh(params["w_hh_f"]), w_hh_b=pad_hh(params["w_hh_b"]),
        b_hn_f=jnp.pad(params["b_hh_f"][:, 2 * H:], ((0, 0), (0, H_pad - H))),
        b_hn_b=jnp.pad(params["b_hh_b"][:, 2 * H:], ((0, 0), (0, H_pad - H))))


def enhanced_rnn_layer(x, lengths, params):
    """x: (B, T, C) float32; lengths: (B,) int -> (B, T, H) float32."""
    B, T, C = x.shape
    H = params["w_hh_f"].shape[0]
    B_pad = max(8, _round_up(B, 8))
    H_pad = _round_up(H, 128)
    T_pad = _round_up(T, TS)
    nblk = T_pad // TS
    RB = TS * B_pad                     # rows per stats/projection block
    rows = T_pad * B_pad
    HP3, HP6 = 3 * H_pad, 6 * H_pad

    kp = _prepare_kernel_params(params, H, H_pad)

    # Time-major, zero-padded rows (row = t * B_pad + b).  Zero padding keeps
    # the BN statistics exact: padded rows contribute 0 to both partial sums and
    # we divide by the *unpadded* count (matching nn.BatchNorm1d, which sees all
    # T frames of every sequence, padded or not).
    x_tm = jnp.pad(jnp.transpose(x, (1, 0, 2)),
                   ((0, T_pad - T), (0, B_pad - B), (0, 0)))
    x_rows = x_tm.reshape(rows, C)
    lens = jnp.pad(lengths.astype(jnp.int32), (0, B_pad - B)).reshape(B_pad, 1)
    max_len = jnp.max(lengths).astype(jnp.int32).reshape(1)

    # ---- Phase 1: BN partial sums, pipelined over row blocks ----
    vmem1 = _vmem_limit(2 * RB * C * 4 + 2 * 2 * C * 4)
    stats = pl.pallas_call(
        bn_stats_kernel,
        out_shape=jax.ShapeDtypeStruct((2, C), jnp.float32),
        grid=(nblk,),
        in_specs=[pl.BlockSpec((RB, C), lambda i: (i, 0))],
        out_specs=pl.BlockSpec((2, C), lambda i: (0, 0)),
        compiler_params=pltpu.CompilerParams(
            dimension_semantics=("arbitrary",), vmem_limit_bytes=vmem1),
    )(x_rows)

    # ---- Phase 2: BN apply + Hardtanh + fused input projection (both dirs) ----
    vmem2 = _vmem_limit(2 * RB * C * 4 + 2 * RB * HP6 * 2 + 2 * C * HP6 * 2
                        + HP6 * 4 + 6 * C * 4)
    gates = pl.pallas_call(
        _make_bn_project_kernel(1.0 / float(T * B)),
        out_shape=jax.ShapeDtypeStruct((rows, HP6), jnp.bfloat16),
        grid=(nblk,),
        in_specs=[pl.BlockSpec((RB, C), lambda i: (i, 0)),
                  pl.BlockSpec((2, C), lambda i: (0, 0)),
                  pl.BlockSpec((1, C), lambda i: (0, 0)),
                  pl.BlockSpec((1, C), lambda i: (0, 0)),
                  pl.BlockSpec((C, HP6), lambda i: (0, 0)),
                  pl.BlockSpec((1, HP6), lambda i: (0, 0))],
        out_specs=pl.BlockSpec((RB, HP6), lambda i: (i, 0)),
        compiler_params=pltpu.CompilerParams(
            dimension_semantics=("parallel",), vmem_limit_bytes=vmem2),
    )(x_rows, stats, params["gamma"], params["beta"],
      kp["w_ih_all"], kp["b_all"])

    gates3 = gates.reshape(T_pad, B_pad, HP6)     # free reshape: time on axis 0

    # ---- Phase 3: bidirectional GRU recurrence over time blocks ----
    vmem3 = _vmem_limit(
        2 * 2 * TS * B_pad * HP3 * 2          # fwd/bwd gate blocks, dbl-buffered
        + 2 * 2 * TS * B_pad * H_pad * 4      # fwd/bwd out blocks, dbl-buffered
        + 2 * 2 * H_pad * HP3 * 2             # hidden weights
        + 2 * B_pad * H_pad * 4               # direction carries
        + 4 * B_pad * 4 + 2 * H_pad * 8)
    grid_spec = pltpu.PrefetchScalarGridSpec(
        num_scalar_prefetch=1,
        grid=(nblk,),
        in_specs=[
            pl.BlockSpec((B_pad, 1), lambda i, ml: (0, 0)),             # lengths
            pl.BlockSpec((TS, B_pad, HP3), lambda i, ml: (i, 0, 0)),    # fwd gates
            pl.BlockSpec((TS, B_pad, HP3),
                         lambda i, ml: (nblk - 1 - i, 0, 1)),           # bwd gates
            pl.BlockSpec((H_pad, HP3), lambda i, ml: (0, 0)),           # W_hh fwd
            pl.BlockSpec((H_pad, HP3), lambda i, ml: (0, 0)),           # W_hh bwd
            pl.BlockSpec((1, H_pad), lambda i, ml: (0, 0)),             # b_hn fwd
            pl.BlockSpec((1, H_pad), lambda i, ml: (0, 0)),             # b_hn bwd
        ],
        out_specs=[
            pl.BlockSpec((TS, B_pad, H_pad), lambda i, ml: (i, 0, 0)),
            pl.BlockSpec((TS, B_pad, H_pad), lambda i, ml: (nblk - 1 - i, 0, 0)),
        ],
        scratch_shapes=[pltpu.VMEM((B_pad, H_pad), jnp.float32),
                        pltpu.VMEM((B_pad, H_pad), jnp.float32)])
    # TODO(synk): on v7x the two directions could become a leading size-2
    # "parallel" grid axis (one TensorCore per direction); kept interleaved on
    # one core here because that is the right schedule on 1-TC v5e/v6e.
    out_f, out_b = pl.pallas_call(
        gru_recurrence_kernel,
        out_shape=(jax.ShapeDtypeStruct((T_pad, B_pad, H_pad), jnp.float32),
                   jax.ShapeDtypeStruct((T_pad, B_pad, H_pad), jnp.float32)),
        grid_spec=grid_spec,
        compiler_params=pltpu.CompilerParams(
            dimension_semantics=("arbitrary",), vmem_limit_bytes=vmem3),
    )(max_len, lens, gates3, gates3, kp["w_hh_f"], kp["w_hh_b"],
      kp["b_hn_f"], kp["b_hn_b"])

    out = (out_f + out_b)[:T, :B, :H]             # bidirectional sum + unpad
    return jnp.transpose(out, (1, 0, 2))          # (B, T, H)


# ---------------------------------------------------------------------------
# Parameters + pure-JAX reference (for correctness checking)
# ---------------------------------------------------------------------------
def init_params(key, input_size, hidden_size):
    """Deterministic params matching the module's shapes; GRU weights stored
    pre-transposed for x @ W layout, gate order [r, z, n] along columns."""
    C, H = input_size, hidden_size
    k = 1.0 / jnp.sqrt(jnp.float32(H))
    keys = jax.random.split(key, 10)
    u = lambda kk, shape: jax.random.uniform(kk, shape, jnp.float32, -k, k)
    return {
        "gamma": 1.0 + 0.1 * jax.random.normal(keys[0], (1, C), jnp.float32),
        "beta": 0.1 * jax.random.normal(keys[1], (1, C), jnp.float32),
        "w_ih_f": u(keys[2], (C, 3 * H)), "b_ih_f": u(keys[3], (1, 3 * H)),
        "w_hh_f": u(keys[4], (H, 3 * H)), "b_hh_f": u(keys[5], (1, 3 * H)),
        "w_ih_b": u(keys[6], (C, 3 * H)), "b_ih_b": u(keys[7], (1, 3 * H)),
        "w_hh_b": u(keys[8], (H, 3 * H)), "b_hh_b": u(keys[9], (1, 3 * H)),
    }


def reference_forward(x, lengths, params):
    """f32 reference: BN (train-mode batch stats) + Hardtanh + bi-GRU + sum."""
    B, T, C = x.shape
    H = params["w_hh_f"].shape[0]
    hi = jax.lax.Precision.HIGHEST
    xf = x.reshape(B * T, C)
    mean = jnp.mean(xf, axis=0)
    var = jnp.mean(jnp.square(xf - mean), axis=0)
    xa = jnp.clip((xf - mean) * lax.rsqrt(var + 1e-5) * params["gamma"][0]
                  + params["beta"][0], 0.0, 20.0).reshape(B, T, C)
    xa_t = jnp.transpose(xa, (1, 0, 2))                       # (T, B, C)

    def run_dir(w_ih, b_ih, w_hh, b_hh, reverse):
        tvec = jnp.arange(T)
        xs = xa_t[::-1] if reverse else xa_t
        tv = tvec[::-1] if reverse else tvec
        valid = (lengths[None, :] > tv[:, None])[..., None]   # (T, B, 1)

        def step(h, inp):
            xt, v = inp
            gi = jnp.dot(xt, w_ih, precision=hi) + b_ih[0]
            gh = jnp.dot(h, w_hh, precision=hi) + b_hh[0]
            r = jax.nn.sigmoid(gi[:, :H] + gh[:, :H])
            z = jax.nn.sigmoid(gi[:, H:2 * H] + gh[:, H:2 * H])
            n = jnp.tanh(gi[:, 2 * H:] + r * gh[:, 2 * H:])
            h_new = (1.0 - z) * n + z * h
            return jnp.where(v, h_new, h), jnp.where(v, h_new, 0.0)

        _, outs = lax.scan(step, jnp.zeros((B, H), jnp.float32), (xs, valid))
        if reverse:
            outs = outs[::-1]
        return jnp.transpose(outs, (1, 0, 2))

    out_f = run_dir(params["w_ih_f"], params["b_ih_f"],
                    params["w_hh_f"], params["b_hh_f"], False)
    out_b = run_dir(params["w_ih_b"], params["b_ih_b"],
                    params["w_hh_b"], params["b_hh_b"], True)
    return out_f + out_b


if __name__ == "__main__":
    # Shapes consistent with EnhancedRNNLayer(input_size=32, hidden_size=32,
    # rnn_type='gru', bidirectional=True): x is (batch, seq, features).
    B, T, C, H = 2, 8, 32, 32
    key = jax.random.PRNGKey(0)
    kx, kp = jax.random.split(key)

    x = jax.random.normal(kx, (B, T, C), jnp.float32)
    lengths = jnp.array([8, 5], jnp.int32)                 # variable valid lengths
    params = init_params(kp, C, H)

    out = enhanced_rnn_layer(x, lengths, params)
    jax.block_until_ready(out)
    assert out.shape == (B, T, H)
    # packed-sequence semantics: outputs past each sequence length are exactly 0
    assert float(jnp.max(jnp.abs(out[1, 5:]))) < 1e-6
    # bf16 MXU operands (and bf16 gate storage) bound the achievable tolerance
    ref = reference_forward(x, lengths, params)
    err = float(jnp.max(jnp.abs(out - ref)))
    assert err < 0.1, f"mismatch vs reference: {err}"
    # TODO(synk): nn.GRU dropout is a no-op for num_layers=1, so it is omitted.
    print("KERNEL_OK")
</pallas_src>

<mosaic_0001>
module attributes {stable_mosaic.version = 11 : i64} {
  func.func @bn_stats_kernel(%arg0: i32, %arg1: memref<64x32xf32, #tpu.memory_space<vmem>>, %arg2: memref<2x32xf32, #tpu.memory_space<vmem>>) attributes {dimension_semantics = [#tpu.dimension_semantics<arbitrary>], iteration_bounds = array<i64: 1>, scalar_prefetch = 0 : i64, scratch_operands = 0 : i64, tpu.core_type = #tpu.core_type<tc>, window_params = [{transform_indices = @transform_0, window_bounds = array<i64: 64, 32>}, {pipeline_mode = #tpu.pipeline_mode<synchronous>, transform_indices = @transform_1, window_bounds = array<i64: 2, 32>}]} {
    %c0_i32 = arith.constant 0 : i32
    %0 = arith.cmpi eq, %arg0, %c0_i32 : i32
    %1 = arith.extui %0 : i1 to i32
    %c0_i32_0 = arith.constant 0 : i32
    %2 = arith.cmpi ne, %1, %c0_i32_0 : i32
    scf.if %2 {
      %cst_7 = arith.constant 0.000000e+00 : f32
      %13 = vector.broadcast %cst_7 : f32 to vector<2x32xf32>
      %c0_8 = arith.constant 0 : index
      %c0_9 = arith.constant 0 : index
      %14 = vector.load %arg2[%c0_8, %c0_9] : memref<2x32xf32, #tpu.memory_space<vmem>>, vector<2x32xf32>
      tpu.vector_store %arg2[%c0_8, %c0_9], %13 {strides = array<i32>} : memref<2x32xf32, #tpu.memory_space<vmem>>, vector<2x32xf32>,
    } else {
    }
    %c0 = arith.constant 0 : index
    %c0_1 = arith.constant 0 : index
    %3 = vector.load %arg1[%c0, %c0_1] : memref<64x32xf32, #tpu.memory_space<vmem>>, vector<64x32xf32>
    %c0_2 = arith.constant 0 : index
    %c0_3 = arith.constant 0 : index
    %4 = vector.load %arg2[%c0_2, %c0_3] : memref<2x32xf32, #tpu.memory_space<vmem>>, vector<2x32xf32>
    %cst = arith.constant dense<0.000000e+00> : vector<32xf32>
    %5 = vector.multi_reduction <add>, %3, %cst [0] : vector<64x32xf32> to vector<32xf32>
    %6 = vector.shape_cast %5 : vector<32xf32> to vector<1x32xf32>
    %7 = arith.mulf %3, %3 : vector<64x32xf32>
    %cst_4 = arith.constant dense<0.000000e+00> : vector<32xf32>
    %8 = vector.multi_reduction <add>, %7, %cst_4 [0] : vector<64x32xf32> to vector<32xf32>
    %9 = vector.shape_cast %8 : vector<32xf32> to vector<1x32xf32>
    %10 = tpu.concatenate %6, %9 in 0 : vector<1x32xf32>, vector<1x32xf32> -> vector<2x32xf32>
    %11 = arith.addf %4, %10 : vector<2x32xf32>
    %c0_5 = arith.constant 0 : index
    %c0_6 = arith.constant 0 : index
    %12 = vector.load %arg2[%c0_5, %c0_6] : memref<2x32xf32, #tpu.memory_space<vmem>>, vector<2x32xf32>
    tpu.vector_store %arg2[%c0_5, %c0_6], %11 {strides = array<i32>} : memref<2x32xf32, #tpu.memory_space<vmem>>, vector<2x32xf32>,
    return
  }
  func.func @transform_0(%arg0: i32) -> (i32, i32) {
    %c0_i32 = arith.constant 0 : i32
    %c0_i32_0 = arith.constant 0 : i32
    return %arg0, %c0_i32 : i32, i32
  }
  func.func @transform_1(%arg0: i32) -> (i32, i32) {
    %c0_i32 = arith.constant 0 : i32
    %c0_i32_0 = arith.constant 0 : i32
    %c0_i32_1 = arith.constant 0 : i32
    return %c0_i32, %c0_i32_0 : i32, i32
  }
}

</mosaic_0001>

<llo_original>
// kernel: tpu_custom_call.1
$region0: #{tpu_custom_call.1}
  #allocation0 [shape = 'u32[]', space=smem, size = 0x4, offset = 0x4, fixed_abs, tag = 'smem constant byte address 0x4 - core index']
  #allocation1 [shape = 'u32[144,128]{1,0:T(1,128)}', space=vmem, size = 0x12000, scoped, tag = 'internal scratch']
  %s0 = inlined_call_operand.vmem [shape: f32[64,32], index: 0, kind: input, shape index: {}]
  %s1 = inlined_call_operand.hbm [shape: f32[2,32], index: 1, kind: output, shape index: {}]
  %s2 = sld [smem:[#allocation0]]
  $region18: #{tpu_custom_call.1} parent=0
    _
  %s4 = ssub.s32 1, %s2
  %s5 = scalar_select 0, %s4, %s2
  $region1: #{tpu_custom_call.1} parent=0
    #allocation2 [shape = 'u8[1024]{0}', space=vmem, size = 0x400, scoped, tag = 'output window, operand 0, single buffered']
    #allocation3 [shape = 's32[1]{0}', space=sflag, size = 0x4, scoped, tag = 'scoped memory for tpu_custom_call.1']
    %6 = vsyncpa [#allocation3], 0
    // Predicated region
    $region2: #{tpu_custom_call.1} parent=1 // pred_check
      _
    $region3: #{tpu_custom_call.1} parent=1 // pred_check_branch
      %8 = sbr.rel (0) target = $region5
    $region4: #{tpu_custom_call.1} parent=1 // pred_region
      _
    $region5: #{tpu_custom_call.1} parent=1 // pred_fallthru
      _
    %p9 = scmp.eq.s32.totalorder 0, 0
    // Predicated region
    $region6: #{tpu_custom_call.1} parent=1 // pred_check
      %p10 = pneg %p9
    $region7: #{tpu_custom_call.1} parent=1 // pred_check_branch
      %12 = sbr.rel (%p10) target = $region9
    $region8: #{tpu_custom_call.1} parent=1 // pred_region
      %vm13 = vcmask 254976
      %14 = vst.msk [vmem:[#allocation2] sm:$0x3] %vm13, 0.0
    $region9: #{tpu_custom_call.1} parent=1 // pred_fallthru
      _
    %v15 = vld [vmem:[%s0] sm:$0xff]
    %v16 = vld [vmem:[%s0 + $0x8] sm:$0xff]
    %v17 = vld [vmem:[%s0 + $0x10] sm:$0xff]
    %v18 = vld [vmem:[%s0 + $0x18] sm:$0xff]
    %v19 = vld [vmem:[%s0 + $0x20] sm:$0xff]
    %v20 = vld [vmem:[%s0 + $0x28] sm:$0xff]
    %v21 = vld [vmem:[%s0 + $0x30] sm:$0xff]
    %v22 = vld [vmem:[%s0 + $0x38] sm:$0xff]
    %v23 = vld [vmem:[#allocation2] sm:$0x3]
    %vm24 = vcmask 261120
    %v25 = vsel %vm24, %v15, 0.0
    %v26 = vsel %vm24, %v16, 0.0
    %v27 = vadd.f32 %v25, %v26
    %v28 = vsel %vm24, %v17, 0.0
    %v29 = vadd.f32 %v27, %v28
    %v30 = vsel %vm24, %v18, 0.0
    %v31 = vadd.f32 %v29, %v30
    %v32 = vsel %vm24, %v19, 0.0
    %v33 = vadd.f32 %v31, %v32
    %v34 = vsel %vm24, %v20, 0.0
    %v35 = vadd.f32 %v33, %v34
    %v36 = vsel %vm24, %v21, 0.0
    %v37 = vadd.f32 %v35, %v36
    %v38 = vsel %vm24, %v22, 0.0
    %v39 = vadd.f32 %v37, %v38
    %v40 = vrot.slane %v39, 4
    %v41 = vadd.f32 %v39, %v40
    %v42 = vrot.slane %v41, 2
    %v43 = vadd.f32 %v41, %v42
    %v44 = vrot.slane %v43, 1
    %v45 = vadd.f32 %v43, %v44
    %v46 = vmul.f32 %v15, %v15
    %v47 = vmul.f32 %v16, %v16
    %v48 = vmul.f32 %v17, %v17
    %v49 = vmul.f32 %v18, %v18
    %v50 = vmul.f32 %v19, %v19
    %v51 = vmul.f32 %v20, %v20
    %v52 = vmul.f32 %v21, %v21
    %v53 = vmul.f32 %v22, %v22
    %v54 = vsel %vm24, %v46, 0.0
    %v55 = vsel %vm24, %v47, 0.0
    %v56 = vadd.f32 %v54, %v55
    %v57 = vsel %vm24, %v48, 0.0
    %v58 = vadd.f32 %v56, %v57
    %v59 = vsel %vm24, %v49, 0.0
    %v60 = vadd.f32 %v58, %v59
    %v61 = vsel %vm24, %v50, 0.0
    %v62 = vadd.f32 %v60, %v61
    %v63 = vsel %vm24, %v51, 0.0
    %v64 = vadd.f32 %v62, %v63
    %v65 = vsel %vm24, %v52, 0.0
    %v66 = vadd.f32 %v64, %v65
    %v67 = vsel %vm24, %v53, 0.0
    %v68 = vadd.f32 %v66, %v67
    %v69 = vrot.slane %v68, 4
    %v70 = vadd.f32 %v68, %v69
    %v71 = vrot.slane %v70, 2
    %v72 = vadd.f32 %v70, %v71
    %v73 = vrot.slane %v72, 1
    %v74 = vadd.f32 %v72, %v73
    %vm75 = vcmask 1040384
    %v76 = vsel %vm75, %v45, %v74
    %v77 = vadd.f32 %v23, %v76
    %vm78 = vcmask 254976
    %79 = vst.msk [vmem:[#allocation2] sm:$0x3] %vm78, %v77
    // Predicated region
    $region10: #{tpu_custom_call.1} parent=1 // pred_check
      _
    $region11: #{tpu_custom_call.1} parent=1 // pred_check_branch
      %81 = sbr.rel (0) target = $region13
    $region12: #{tpu_custom_call.1} parent=1 // pred_region
      %s83 = ssub.s32 32, 32
      %84 = vsyncadd [#allocation3], %s83
      %s86 = sshll.u32 [#allocation2], 4
      %s87 = int_to_ptr.vmem [resolvable:$true] %s86
      %89 = dma.vmem_to_hbm [thread:$0]  %s87, 32, %s1, [#allocation3]
    $region13: #{tpu_custom_call.1} parent=1 // pred_fallthru
      _
    // Predicated region
    $region14: #{tpu_custom_call.1} parent=1 // pred_check
      _
    $region15: #{tpu_custom_call.1} parent=1 // pred_check_branch
      %91 = sbr.rel (0) target = $region17
    $region16: #{tpu_custom_call.1} parent=1 // pred_region
      %92 = dma.done [#allocation3], 32
    $region17: #{tpu_custom_call.1} parent=1 // pred_fallthru
      _
    %93 = vsyncpa [#allocation3], 1

</llo_original>
